<compile_context>
chip_gen: v7x
topology: tpu7x:2x2x1
jax: 0.10.0
libtpu: 0.0.40
codegen_flags: <defaults>
</compile_context>

<pallas_src>
import jax
import jax.numpy as jnp
from jax.experimental import pallas as pl
from jax.experimental.pallas import tpu as pltpu


def _nfm_kernel(emb_ref, lin_ref,
                w1_ref, b1_ref,
                w2_ref, b2_ref,
                wo_ref, bo_ref,
                out_ref):
    # ---- FM cross term (FeaturesCross, reduce_sum=False), batch on lanes ----
    # emb_ref: [F, D, Bb] bf16 -> upcast once; cross term computed in f32
    # (cancellation in sum^2 - sum_sq is the numerically delicate step).
    e = emb_ref[...].astype(jnp.float32)                   # [F, D, Bb]
    sum_f = jnp.sum(e, axis=0)                             # [D, Bb]
    sum_sq = jnp.sum(e * e, axis=0)                        # [D, Bb]
    cross = 0.5 * (sum_f * sum_f - sum_sq)                 # [D, Bb]
    # BatchNorm1d(embed_dim) + Dropout are folded into w1/b1 (eval mode).

    # ---- MLP: Linear -> (folded BN) -> ReLU (x2), weights pre-transposed ----
    h = jnp.dot(w1_ref[...], cross, preferred_element_type=jnp.float32)
    h = jnp.maximum(h + b1_ref[...], 0.0)                  # [H1, Bb]
    h = jnp.dot(w2_ref[...], h, preferred_element_type=jnp.float32)
    h = jnp.maximum(h + b2_ref[...], 0.0)                  # [H2, Bb]

    # Output layer as a [1, H2] @ [H2, Bb] contraction -> lane-dense [1, Bb].
    f = jnp.dot(wo_ref[...], h, preferred_element_type=jnp.float32)

    # ---- sigmoid(w_0 + linear(x) + mlp(cross)); w_0 / biases folded into bo --
    out_ref[...] = jax.nn.sigmoid(f + lin_ref[...] + bo_ref[...])


def make_params(field_dims, embed_dim, mlp_dims, key):
    total = int(sum(field_dims))
    ks = jax.random.split(key, 8)
    p = {}
    p["offsets"] = jnp.array([0] + list(jnp.cumsum(jnp.array(field_dims))[:-1]),
                             dtype=jnp.int32)
    p["emb_table"] = 0.05 * jax.random.normal(ks[0], (total, embed_dim), jnp.float32)
    p["lin_table"] = 0.05 * jax.random.normal(ks[1], (total, 1), jnp.float32)
    p["lin_bias"] = jnp.zeros((), jnp.float32)
    p["w_0"] = jnp.zeros((), jnp.float32)
    # BatchNorm1d(embed_dim) default init (eval-mode running stats)
    p["bn_c"] = dict(gamma=jnp.ones((embed_dim,)), beta=jnp.zeros((embed_dim,)),
                     mean=jnp.zeros((embed_dim,)), var=jnp.ones((embed_dim,)))
    # MLP: embed_dim -> mlp_dims[0] -> mlp_dims[1] -> 1
    dims = [embed_dim] + list(mlp_dims)
    p["mlp"] = []
    for i in range(len(mlp_dims)):
        w = 0.1 * jax.random.normal(ks[2 + i], (dims[i], dims[i + 1]), jnp.float32)
        b = 0.01 * jax.random.normal(ks[4 + i], (dims[i + 1],), jnp.float32)
        bn = dict(gamma=jnp.ones((dims[i + 1],)), beta=jnp.zeros((dims[i + 1],)),
                  mean=jnp.zeros((dims[i + 1],)), var=jnp.ones((dims[i + 1],)))
        p["mlp"].append((w, b, bn))
    p["w_out"] = 0.1 * jax.random.normal(ks[6], (dims[-1], 1), jnp.float32)
    p["b_out"] = 0.01 * jax.random.normal(ks[7], (1,), jnp.float32)
    return p


def _bn_fold(bn, eps=1e-5):
    scale = bn["gamma"] / jnp.sqrt(bn["var"] + eps)
    shift = bn["beta"] - bn["mean"] * scale
    return scale, shift


def nfm_forward(x, p, block_b=1024):
    """x: [B, F] int32 field indices -> [B, 1] float32 probabilities."""
    B, F = x.shape
    D = p["emb_table"].shape[1]

    # ---- glue in XLA: gathers, per-row linear sum, BN folding ---------------
    idx = x + p["offsets"][None, :]                                  # [B, F]
    emb = jnp.take(p["emb_table"], idx, axis=0)                      # [B, F, D]
    lin = jnp.sum(jnp.take(p["lin_table"], idx, axis=0)[..., 0], axis=1)  # [B]

    cs, ct = _bn_fold(p["bn_c"])
    (w1, b1, bn1), (w2, b2, bn2) = p["mlp"]
    s1, t1 = _bn_fold(bn1)
    s2, t2 = _bn_fold(bn2)
    # Fold cross-BN and layer-BNs into the Linear weights/biases.
    w1f = cs[:, None] * w1 * s1[None, :]                             # [D, H1]
    b1f = ct @ (w1 * s1[None, :]) + b1 * s1 + t1                     # [H1]
    w2f = w2 * s2[None, :]                                           # [H1, H2]
    b2f = b2 * s2 + t2                                               # [H2]
    # Fold w_0, FeaturesLinear bias and the output bias into one scalar.
    bo = (p["b_out"] + p["w_0"] + p["lin_bias"]).reshape(1, 1)

    # Pre-transpose weights for the [H, B] activation layout.
    w1t = w1f.T.astype(jnp.float32)                                  # [H1, D]
    w2t = w2f.T.astype(jnp.float32)                                  # [H2, H1]
    wot = p["w_out"].T.astype(jnp.float32)                           # [1, H2]
    H1, H2 = w1t.shape[0], w2t.shape[0]

    # ---- lane-dense batch layout: pad B and tile it over a parallel grid ----
    bb = min(block_b, pl.cdiv(B, 128) * 128)                         # block of batch
    Bp = pl.cdiv(B, bb) * bb
    emb_t = jnp.transpose(emb, (1, 2, 0)).astype(jnp.bfloat16)       # [F, D, B]
    emb_t = jnp.pad(emb_t, ((0, 0), (0, 0), (0, Bp - B)))
    lin_t = jnp.pad(lin, (0, Bp - B)).reshape(1, Bp).astype(jnp.float32)

    out = pl.pallas_call(
        _nfm_kernel,
        out_shape=jax.ShapeDtypeStruct((1, Bp), jnp.float32),
        grid=(Bp // bb,),
        in_specs=[
            pl.BlockSpec((F, D, bb), lambda i: (0, 0, i)),   # embeddings (tiled on B)
            pl.BlockSpec((1, bb), lambda i: (0, i)),         # linear term (tiled on B)
            pl.BlockSpec((H1, D), lambda i: (0, 0)),         # w1 (resident)
            pl.BlockSpec((H1, 1), lambda i: (0, 0)),         # b1
            pl.BlockSpec((H2, H1), lambda i: (0, 0)),        # w2
            pl.BlockSpec((H2, 1), lambda i: (0, 0)),         # b2
            pl.BlockSpec((1, H2), lambda i: (0, 0)),         # w_out
            pl.BlockSpec((1, 1), lambda i: (0, 0)),          # folded bias
        ],
        out_specs=pl.BlockSpec((1, bb), lambda i: (0, i)),
        compiler_params=pltpu.CompilerParams(
            dimension_semantics=("parallel",),
            vmem_limit_bytes=48 * 1024 * 1024,
        ),
    )(emb_t, lin_t,
      w1t, b1f.reshape(H1, 1).astype(jnp.float32),
      w2t, b2f.reshape(H2, 1).astype(jnp.float32),
      wot, bo.astype(jnp.float32))

    return out[0, :B].reshape(B, 1)


def nfm_reference(x, p):
    """Pure-JAX (f32) reference of the same forward pass (for validation)."""
    idx = x + p["offsets"][None, :]
    emb = jnp.take(p["emb_table"], idx, axis=0)
    cross = 0.5 * (jnp.sum(emb, 1) ** 2 - jnp.sum(emb * emb, 1))
    cs, ct = _bn_fold(p["bn_c"])
    h = cross * cs + ct
    for w, b, bn in p["mlp"]:
        s, t = _bn_fold(bn)
        h = jnp.maximum((h @ w + b) * s + t, 0.0)
    f_out = h @ p["w_out"] + p["b_out"]
    lin = jnp.sum(jnp.take(p["lin_table"], idx, axis=0)[..., 0], 1, keepdims=True) \
        + p["lin_bias"]
    return jax.nn.sigmoid(p["w_0"] + lin + f_out)


if __name__ == "__main__":
    field_dims = [11, 13, 17, 19]
    embed_dim = 16
    mlp_dims = (32, 16)
    B, F = 8, len(field_dims)

    key = jax.random.PRNGKey(0)
    kx, kp = jax.random.split(key)
    params = make_params(field_dims, embed_dim, mlp_dims, kp)
    # deterministic integer field indices, each within its field's cardinality
    x = jnp.stack(
        [jax.random.randint(jax.random.fold_in(kx, i), (B,), 0, field_dims[i])
         for i in range(F)], axis=1).astype(jnp.int32)           # [B, F]

    out = jax.block_until_ready(nfm_forward(x, params))
    ref = jax.block_until_ready(nfm_reference(x, params))
    assert out.shape == (B, 1)
    # bf16 embedding DMA introduces ~1e-4 level differences vs the f32 reference
    assert jnp.allclose(out, ref, atol=2e-3, rtol=2e-3), (out, ref)
    print("KERNEL_OK")
</pallas_src>

<mosaic_0001>
module attributes {stable_mosaic.version = 11 : i64} {
  func.func @_nfm_kernel(%arg0: i32, %arg1: memref<4x16x128xbf16, #tpu.memory_space<vmem>>, %arg2: memref<1x128xf32, #tpu.memory_space<vmem>>, %arg3: memref<32x16xf32, #tpu.memory_space<vmem>>, %arg4: memref<32x1xf32, #tpu.memory_space<vmem>>, %arg5: memref<16x32xf32, #tpu.memory_space<vmem>>, %arg6: memref<16x1xf32, #tpu.memory_space<vmem>>, %arg7: memref<1x16xf32, #tpu.memory_space<vmem>>, %arg8: memref<1x1xf32, #tpu.memory_space<vmem>>, %arg9: memref<1x128xf32, #tpu.memory_space<vmem>>) attributes {dimension_semantics = [#tpu.dimension_semantics<parallel>], iteration_bounds = array<i64: 1>, scalar_prefetch = 0 : i64, scratch_operands = 0 : i64, tpu.core_type = #tpu.core_type<tc>, window_params = [{transform_indices = @transform_0, window_bounds = array<i64: 4, 16, 128>}, {transform_indices = @transform_1, window_bounds = array<i64: 1, 128>}, {pipeline_mode = #tpu.pipeline_mode<synchronous>, transform_indices = @transform_2, window_bounds = array<i64: 32, 16>}, {pipeline_mode = #tpu.pipeline_mode<synchronous>, transform_indices = @transform_3, window_bounds = array<i64: 32, 1>}, {pipeline_mode = #tpu.pipeline_mode<synchronous>, transform_indices = @transform_4, window_bounds = array<i64: 16, 32>}, {pipeline_mode = #tpu.pipeline_mode<synchronous>, transform_indices = @transform_5, window_bounds = array<i64: 16, 1>}, {pipeline_mode = #tpu.pipeline_mode<synchronous>, transform_indices = @transform_6, window_bounds = array<i64: 1, 16>}, {pipeline_mode = #tpu.pipeline_mode<synchronous>, transform_indices = @transform_7, window_bounds = array<i64: 1, 1>}, {transform_indices = @transform_8, window_bounds = array<i64: 1, 128>}]} {
    %c0 = arith.constant 0 : index
    %c0_0 = arith.constant 0 : index
    %c0_1 = arith.constant 0 : index
    %0 = vector.load %arg1[%c0, %c0_0, %c0_1] : memref<4x16x128xbf16, #tpu.memory_space<vmem>>, vector<4x16x128xbf16>
    %1 = arith.extf %0 : vector<4x16x128xbf16> to vector<4x16x128xf32>
    %cst = arith.constant dense<0.000000e+00> : vector<16x128xf32>
    %2 = vector.multi_reduction <add>, %1, %cst [0] : vector<4x16x128xf32> to vector<16x128xf32>
    %3 = arith.mulf %1, %1 : vector<4x16x128xf32>
    %cst_2 = arith.constant dense<0.000000e+00> : vector<16x128xf32>
    %4 = vector.multi_reduction <add>, %3, %cst_2 [0] : vector<4x16x128xf32> to vector<16x128xf32>
    %5 = arith.mulf %2, %2 : vector<16x128xf32>
    %6 = arith.subf %5, %4 : vector<16x128xf32>
    %cst_3 = arith.constant 5.000000e-01 : f32
    %7 = vector.broadcast %cst_3 : f32 to vector<16x128xf32>
    %8 = arith.mulf %7, %6 : vector<16x128xf32>
    %c0_4 = arith.constant 0 : index
    %c0_5 = arith.constant 0 : index
    %9 = vector.load %arg3[%c0_4, %c0_5] : memref<32x16xf32, #tpu.memory_space<vmem>>, vector<32x16xf32>
    %cst_6 = arith.constant dense<0.000000e+00> : vector<32x128xf32>
    %10 = tpu.matmul %9, %8, %cst_6 {dimension_numbers = #tpu.dot_dimension_numbers<[1], [0], [0], [1], [0, 0, 1, 1], [], []>} : vector<32x16xf32>, vector<16x128xf32>, vector<32x128xf32> -> vector<32x128xf32>
    %c0_7 = arith.constant 0 : index
    %c0_8 = arith.constant 0 : index
    %11 = vector.load %arg4[%c0_7, %c0_8] : memref<32x1xf32, #tpu.memory_space<vmem>>, vector<32x1xf32>
    %12 = vector.broadcast %11 : vector<32x1xf32> to vector<32x128xf32>
    %13 = arith.addf %10, %12 : vector<32x128xf32>
    %cst_9 = arith.constant 0.000000e+00 : f32
    %14 = vector.broadcast %cst_9 : f32 to vector<32x128xf32>
    %15 = arith.maximumf %13, %14 : vector<32x128xf32>
    %c0_10 = arith.constant 0 : index
    %c0_11 = arith.constant 0 : index
    %16 = vector.load %arg5[%c0_10, %c0_11] : memref<16x32xf32, #tpu.memory_space<vmem>>, vector<16x32xf32>
    %cst_12 = arith.constant dense<0.000000e+00> : vector<16x128xf32>
    %17 = tpu.matmul %16, %15, %cst_12 {dimension_numbers = #tpu.dot_dimension_numbers<[1], [0], [0], [1], [0, 0, 1, 1], [], []>} : vector<16x32xf32>, vector<32x128xf32>, vector<16x128xf32> -> vector<16x128xf32>
    %c0_13 = arith.constant 0 : index
    %c0_14 = arith.constant 0 : index
    %18 = vector.load %arg6[%c0_13, %c0_14] : memref<16x1xf32, #tpu.memory_space<vmem>>, vector<16x1xf32>
    %19 = vector.broadcast %18 : vector<16x1xf32> to vector<16x128xf32>
    %20 = arith.addf %17, %19 : vector<16x128xf32>
    %cst_15 = arith.constant 0.000000e+00 : f32
    %21 = vector.broadcast %cst_15 : f32 to vector<16x128xf32>
    %22 = arith.maximumf %20, %21 : vector<16x128xf32>
    %c0_16 = arith.constant 0 : index
    %c0_17 = arith.constant 0 : index
    %23 = vector.load %arg7[%c0_16, %c0_17] : memref<1x16xf32, #tpu.memory_space<vmem>>, vector<1x16xf32>
    %cst_18 = arith.constant dense<0.000000e+00> : vector<1x128xf32>
    %24 = tpu.matmul %23, %22, %cst_18 {dimension_numbers = #tpu.dot_dimension_numbers<[1], [0], [0], [1], [0, 0, 1, 1], [], []>} : vector<1x16xf32>, vector<16x128xf32>, vector<1x128xf32> -> vector<1x128xf32>
    %c0_19 = arith.constant 0 : index
    %c0_20 = arith.constant 0 : index
    %25 = vector.load %arg2[%c0_19, %c0_20] : memref<1x128xf32, #tpu.memory_space<vmem>>, vector<1x128xf32>
    %26 = arith.addf %24, %25 : vector<1x128xf32>
    %c0_21 = arith.constant 0 : index
    %c0_22 = arith.constant 0 : index
    %27 = vector.load %arg8[%c0_21, %c0_22] : memref<1x1xf32, #tpu.memory_space<vmem>>, vector<1x1xf32>
    %28 = vector.broadcast %27 : vector<1x1xf32> to vector<1x128xf32>
    %29 = arith.addf %26, %28 : vector<1x128xf32>
    %30 = arith.negf %29 : vector<1x128xf32>
    %31 = math.exp %30 : vector<1x128xf32>
    %cst_23 = arith.constant 1.000000e+00 : f32
    %32 = vector.broadcast %cst_23 : f32 to vector<1x128xf32>
    %33 = arith.addf %32, %31 : vector<1x128xf32>
    %34 = arith.divf %32, %33 : vector<1x128xf32>
    %c0_24 = arith.constant 0 : index
    %c0_25 = arith.constant 0 : index
    %35 = vector.load %arg9[%c0_24, %c0_25] : memref<1x128xf32, #tpu.memory_space<vmem>>, vector<1x128xf32>
    tpu.vector_store %arg9[%c0_24, %c0_25], %34 {strides = array<i32>} : memref<1x128xf32, #tpu.memory_space<vmem>>, vector<1x128xf32>,
    return
  }
  func.func @transform_0(%arg0: i32) -> (i32, i32, i32) {
    %c0_i32 = arith.constant 0 : i32
    %c0_i32_0 = arith.constant 0 : i32
    %c0_i32_1 = arith.constant 0 : i32
    return %c0_i32, %c0_i32_0, %arg0 : i32, i32, i32
  }
  func.func @transform_1(%arg0: i32) -> (i32, i32) {
    %c0_i32 = arith.constant 0 : i32
    %c0_i32_0 = arith.constant 0 : i32
    return %c0_i32, %arg0 : i32, i32
  }
  func.func @transform_2(%arg0: i32) -> (i32, i32) {
    %c0_i32 = arith.constant 0 : i32
    %c0_i32_0 = arith.constant 0 : i32
    %c0_i32_1 = arith.constant 0 : i32
    return %c0_i32, %c0_i32_0 : i32, i32
  }
  func.func @transform_3(%arg0: i32) -> (i32, i32) {
    %c0_i32 = arith.constant 0 : i32
    %c0_i32_0 = arith.constant 0 : i32
    %c0_i32_1 = arith.constant 0 : i32
    return %c0_i32, %c0_i32_0 : i32, i32
  }
  func.func @transform_4(%arg0: i32) -> (i32, i32) {
    %c0_i32 = arith.constant 0 : i32
    %c0_i32_0 = arith.constant 0 : i32
    %c0_i32_1 = arith.constant 0 : i32
    return %c0_i32, %c0_i32_0 : i32, i32
  }
  func.func @transform_5(%arg0: i32) -> (i32, i32) {
    %c0_i32 = arith.constant 0 : i32
    %c0_i32_0 = arith.constant 0 : i32
    %c0_i32_1 = arith.constant 0 : i32
    return %c0_i32, %c0_i32_0 : i32, i32
  }
  func.func @transform_6(%arg0: i32) -> (i32, i32) {
    %c0_i32 = arith.constant 0 : i32
    %c0_i32_0 = arith.constant 0 : i32
    %c0_i32_1 = arith.constant 0 : i32
    return %c0_i32, %c0_i32_0 : i32, i32
  }
  func.func @transform_7(%arg0: i32) -> (i32, i32) {
    %c0_i32 = arith.constant 0 : i32
    %c0_i32_0 = arith.constant 0 : i32
    %c0_i32_1 = arith.constant 0 : i32
    return %c0_i32, %c0_i32_0 : i32, i32
  }
  func.func @transform_8(%arg0: i32) -> (i32, i32) {
    %c0_i32 = arith.constant 0 : i32
    %c0_i32_0 = arith.constant 0 : i32
    return %c0_i32, %arg0 : i32, i32
  }
}

</mosaic_0001>

<llo_original>
// kernel: tpu_custom_call.1
$region0: #{tpu_custom_call.1}
  #allocation0 [shape = 'u32[]', space=smem, size = 0x4, offset = 0x4, fixed_abs, tag = 'smem constant byte address 0x4 - core index']
  #allocation1 [shape = 'u32[144,128]{1,0:T(1,128)}', space=vmem, size = 0x12000, scoped, tag = 'internal scratch']
  #allocation2 [shape = 'f32[1,1]{1,0:T(1,128)S(1)}', space=vmem, size = 0x200, scoped, tag = 'scoped memory for tpu_custom_call.1']
  %s0 = inlined_call_operand.vmem [shape: bf16[4,16,128], index: 0, kind: input, shape index: {}]
  %s1 = inlined_call_operand.vmem [shape: f32[1,128], index: 1, kind: input, shape index: {}]
  %s2 = inlined_call_operand.vmem [shape: f32[32,16], index: 2, kind: input, shape index: {}]
  %s3 = inlined_call_operand.vmem [shape: f32[32,1], index: 3, kind: input, shape index: {}]
  %s4 = inlined_call_operand.vmem [shape: f32[16,32], index: 4, kind: input, shape index: {}]
  %s5 = inlined_call_operand.vmem [shape: f32[16,1], index: 5, kind: input, shape index: {}]
  %s6 = inlined_call_operand.vmem [shape: f32[1,16], index: 6, kind: input, shape index: {}]
  %s7 = inlined_call_operand.<no memory space> [shape: f32[1,1], index: 7, kind: input, shape index: {}]
  %s8 = inlined_call_operand.hbm [shape: f32[1,128], index: 8, kind: output, shape index: {}]
  %s9 = sld [smem:[#allocation0]]
  $region42: #{tpu_custom_call.1} parent=0
    _
  %s11 = ssub.s32 1, %s9
  %s12 = scalar_select 0, %s11, %s9
  %v13 = vstv %s7
  %14 = vst [vmem:[#allocation2] sm:$0x1] %v13
  $region1: #{tpu_custom_call.1} parent=0
    #allocation3 [shape = 'u8[512]{0}', space=vmem, size = 0x400, scoped, tag = 'output window, operand 0, single buffered']
    #allocation4 [shape = 's32[1]{0}', space=sflag, size = 0x4, scoped, tag = 'scoped memory for tpu_custom_call.1']
    %15 = vsyncpa [#allocation4], 0
    // Predicated region
    $region2: #{tpu_custom_call.1} parent=1 // pred_check
      _
    $region3: #{tpu_custom_call.1} parent=1 // pred_check_branch
      %17 = sbr.rel (0) target = $region5
    $region4: #{tpu_custom_call.1} parent=1 // pred_region
      _
    $region5: #{tpu_custom_call.1} parent=1 // pred_fallthru
      _
    // Predicated region
    $region6: #{tpu_custom_call.1} parent=1 // pred_check
      _
    $region7: #{tpu_custom_call.1} parent=1 // pred_check_branch
      %19 = sbr.rel (0) target = $region9
    $region8: #{tpu_custom_call.1} parent=1 // pred_region
      _
    $region9: #{tpu_custom_call.1} parent=1 // pred_fallthru
      _
    // Predicated region
    $region10: #{tpu_custom_call.1} parent=1 // pred_check
      _
    $region11: #{tpu_custom_call.1} parent=1 // pred_check_branch
      %21 = sbr.rel (0) target = $region13
    $region12: #{tpu_custom_call.1} parent=1 // pred_region
      _
    $region13: #{tpu_custom_call.1} parent=1 // pred_fallthru
      _
    // Predicated region
    $region14: #{tpu_custom_call.1} parent=1 // pred_check
      _
    $region15: #{tpu_custom_call.1} parent=1 // pred_check_branch
      %23 = sbr.rel (0) target = $region17
    $region16: #{tpu_custom_call.1} parent=1 // pred_region
      _
    $region17: #{tpu_custom_call.1} parent=1 // pred_fallthru
      _
    // Predicated region
    $region18: #{tpu_custom_call.1} parent=1 // pred_check
      _
    $region19: #{tpu_custom_call.1} parent=1 // pred_check_branch
      %25 = sbr.rel (0) target = $region21
    $region20: #{tpu_custom_call.1} parent=1 // pred_region
      _
    $region21: #{tpu_custom_call.1} parent=1 // pred_fallthru
      _
    // Predicated region
    $region22: #{tpu_custom_call.1} parent=1 // pred_check
      _
    $region23: #{tpu_custom_call.1} parent=1 // pred_check_branch
      %27 = sbr.rel (0) target = $region25
    $region24: #{tpu_custom_call.1} parent=1 // pred_region
      _
    $region25: #{tpu_custom_call.1} parent=1 // pred_fallthru
      _
    // Predicated region
    $region26: #{tpu_custom_call.1} parent=1 // pred_check
      _
    $region27: #{tpu_custom_call.1} parent=1 // pred_check_branch
      %29 = sbr.rel (0) target = $region29
    $region28: #{tpu_custom_call.1} parent=1 // pred_region
      _
    $region29: #{tpu_custom_call.1} parent=1 // pred_fallthru
      _
    // Predicated region
    $region30: #{tpu_custom_call.1} parent=1 // pred_check
      _
    $region31: #{tpu_custom_call.1} parent=1 // pred_check_branch
      %31 = sbr.rel (0) target = $region33
    $region32: #{tpu_custom_call.1} parent=1 // pred_region
      _
    $region33: #{tpu_custom_call.1} parent=1 // pred_fallthru
      _
    %v32 = vld [vmem:[%s0] sm:$0xf]
    %v33 = vld [vmem:[%s0 + $0x4] sm:$0xf]
    %v34 = vld [vmem:[%s0 + $0x8] sm:$0xf]
    %v35 = vld [vmem:[%s0 + $0xc] sm:$0xf]
    %v36 = vld [vmem:[%s0 + $0x10] sm:$0xf]
    %v37 = vld [vmem:[%s0 + $0x14] sm:$0xf]
    %v38 = vld [vmem:[%s0 + $0x18] sm:$0xf]
    %v39 = vld [vmem:[%s0 + $0x1c] sm:$0xf]
    %v40 = vunpack.c.l.bf16 %v32
    %v41 = vunpack.c.l.bf16 %v33
    %v42 = vunpack.c.l.bf16 %v34
    %v43 = vunpack.c.l.bf16 %v35
    %v44 = vunpack.c.l.bf16 %v36
    %v45 = vunpack.c.l.bf16 %v37
    %v46 = vunpack.c.l.bf16 %v38
    %v47 = vunpack.c.l.bf16 %v39
    %v48 = vadd.f32 %v40, %v42
    %v49 = vadd.f32 %v48, %v44
    %v50 = vadd.f32 %v49, %v46
    %v51 = vadd.f32 %v41, %v43
    %v52 = vadd.f32 %v51, %v45
    %v53 = vadd.f32 %v52, %v47
    %v54 = vmul.f32 %v40, %v40
    %v55 = vmul.f32 %v41, %v41
    %v56 = vmul.f32 %v42, %v42
    %v57 = vmul.f32 %v43, %v43
    %v58 = vmul.f32 %v44, %v44
    %v59 = vmul.f32 %v45, %v45
    %v60 = vmul.f32 %v46, %v46
    %v61 = vmul.f32 %v47, %v47
    %v62 = vadd.f32 %v54, %v56
    %v63 = vadd.f32 %v62, %v58
    %v64 = vadd.f32 %v63, %v60
    %v65 = vadd.f32 %v55, %v57
    %v66 = vadd.f32 %v65, %v59
    %v67 = vadd.f32 %v66, %v61
    %v68 = vmul.f32 %v50, %v50
    %v69 = vmul.f32 %v53, %v53
    %v70 = vsub.f32 %v68, %v64
    %v71 = vsub.f32 %v69, %v67
    %v72 = vmul.f32 %v70, 0.5
    %v73 = vmul.f32 %v71, 0.5
    %v74 = vld [vmem:[%s2] sm:$0xff]
    %v75 = vld [vmem:[%s2 + $0x8] sm:$0xff]
    %v76 = vld [vmem:[%s2 + $0x10] sm:$0xff]
    %v77 = vld [vmem:[%s2 + $0x18] sm:$0xff]
    %v78 = vld [vmem:[%s3] sm:$0xff]
    %v79 = vld [vmem:[%s3 + $0x8] sm:$0xff]
    %v80 = vld [vmem:[%s3 + $0x10] sm:$0xff]
    %v81 = vld [vmem:[%s3 + $0x18] sm:$0xff]
    %83 = vset.pattern.permute.xlu0 0
    %84 = vperm.xlu0 %83, %v78
    %v85 = vpop.permute.xlu0 %84
    %88 = vset.pattern.permute.xlu0 0
    %89 = vperm.xlu0 %88, %v79
    %v90 = vpop.permute.xlu0 %89
    %93 = vset.pattern.permute.xlu0 0
    %94 = vperm.xlu0 %93, %v80
    %v95 = vpop.permute.xlu0 %94
    %98 = vset.pattern.permute.xlu0 0
    %99 = vperm.xlu0 %98, %v81
    %v100 = vpop.permute.xlu0 %99
    %vm102 = vcmask 130048
    %v104 = vsel %vm102, %v74, 0
    %v107 = vsel %vm102, %v75, 0
    %v110 = vsel %vm102, %v76, 0
    %v113 = vsel %vm102, %v77, 0
    %115 = vmatprep.subr.mxu0 0.0
    %116 = vmatpush1.msra.mxu0 %v72
    %117 = vmatprep.subr.mxu0 0.0
    %118 = vmatpush1.msra.mxu0 %v73
    %119 = vmatprep.subr.mxu0 0.0
    %120 = vmatpush1.msra.mxu0 0.0
    %121 = vmatprep.subr.mxu0 0.0
    %122 = vmatpush1.msra.mxu0 0.0
    %123 = vmatprep.subr.mxu0 0.0
    %124 = vmatpush1.msra.mxu0 0.0
    %125 = vmatprep.subr.mxu0 0.0
    %126 = vmatpush1.msra.mxu0 0.0
    %127 = vmatprep.subr.mxu0 0.0
    %128 = vmatpush1.msra.mxu0 0.0
    %129 = vmatprep.subr.mxu0 0.0
    %130 = vmatpush1.msra.mxu0 0.0
    %131 = vmatprep.subr.mxu0 0.0
    %132 = vmatpush1.msra.mxu0 0.0
    %133 = vmatprep.subr.mxu0 0.0
    %134 = vmatpush1.msra.mxu0 0.0
    %135 = vmatprep.subr.mxu0 0.0
    %136 = vmatpush1.msra.mxu0 0.0
    %137 = vmatprep.subr.mxu0 0.0
    %138 = vmatpush1.msra.mxu0 0.0
    %139 = vmatprep.subr.mxu0 0.0
    %140 = vmatpush1.msra.mxu0 0.0
    %141 = vmatprep.subr.mxu0 0.0
    %142 = vmatpush1.msra.mxu0 0.0
    %143 = vmatprep.subr.mxu0 0.0
    %144 = vmatpush1.msra.mxu0 0.0
    %145 = vmatprep.subr.mxu0 0.0
    %146 = vmatpush1.msra.mxu0 0.0
    %147 = vmatprep.subr.mxu0 0.0
    %148 = vmatpush1.msra.mxu0 0.0
    %149 = vmatprep.subr.mxu0 0.0
    %150 = vmatpush1.msra.mxu0 0.0
    %151 = vmatprep.subr.mxu0 0.0
    %152 = vmatpush1.msra.mxu0 0.0
    %153 = vmatprep.subr.mxu0 0.0
    %154 = vmatpush1.msra.mxu0 0.0
    %155 = vmatprep.subr.mxu0 0.0
    %156 = vmatpush1.msra.mxu0 0.0
    %157 = vmatprep.subr.mxu0 0.0
    %158 = vmatpush1.msra.mxu0 0.0
    %159 = vmatprep.subr.mxu0 0.0
    %160 = vmatpush1.msra.mxu0 0.0
    %161 = vmatprep.subr.mxu0 0.0
    %162 = vmatpush1.msra.mxu0 0.0
    %163 = vmatprep.subr.mxu0 0.0
    %164 = vmatpush1.msra.mxu0 0.0
    %165 = vmatprep.subr.mxu0 0.0
    %166 = vmatpush1.msra.mxu0 0.0
    %167 = vmatprep.subr.mxu0 0.0
    %168 = vmatpush1.msra.mxu0 0.0
    %169 = vmatprep.subr.mxu0 0.0
    %170 = vmatpush1.msra.mxu0 0.0
    %171 = vmatprep.subr.mxu0 0.0
    %172 = vmatpush1.msra.mxu0 0.0
    %173 = vmatprep.subr.mxu0 0.0
    %174 = vmatpush1.msra.mxu0 0.0
    %175 = vmatprep.subr.mxu0 0.0
    %176 = vmatpush1.msra.mxu0 0.0
    %177 = vmatprep.subr.mxu0 0.0
    %178 = vmatpush1.msra.mxu0 0.0
    %179 = vmatprep.mubr.f32.mxu0 0.0
    %180 = vmatmul.mubr.f32.gmra.mrb[0].mxu0 %v104
    %v181 = vpop.f32.mrb[0].mxu0
    %v182 = vadd.f32 %v85, %v181
    %v183 = vpop.f32.mrb[0].mxu0
    %184 = vmatprep.mubr.f32.mxu0 0.0
    %185 = vmatmul.mubr.f32.gmra.mrb[0].mxu0 %v107
    %v186 = vpop.f32.mrb[0].mxu0
    %v187 = vadd.f32 %v90, %v186
    %v188 = vpop.f32.mrb[0].mxu0
    %189 = vmatprep.mubr.f32.mxu0 0.0
    %190 = vmatmul.mubr.f32.gmra.mrb[0].mxu0 %v110
    %v191 = vpop.f32.mrb[0].mxu0
    %v192 = vadd.f32 %v95, %v191
    %v193 = vpop.f32.mrb[0].mxu0
    %194 = vmatprep.mubr.f32.mxu0 0.0
    %195 = vmatmul.mubr.f32.gmra.mrb[0].mxu0 %v113
    %v196 = vpop.f32.mrb[0].mxu0
    %v197 = vadd.f32 %v100, %v196
    %v198 = vpop.f32.mrb[0].mxu0
    %199 = vdwg.mxu0
    %v200 = vmax.f32 %v182, 0.0
    %v201 = vmax.f32 %v187, 0.0
    %v202 = vmax.f32 %v192, 0.0
    %v203 = vmax.f32 %v197, 0.0
    %v204 = vld [vmem:[%s4] sm:$0xff]
    %v205 = vld [vmem:[%s4 + $0x8] sm:$0xff]
    %v206 = vld [vmem:[%s5] sm:$0xff]
    %v207 = vld [vmem:[%s5 + $0x8] sm:$0xff]
    %209 = vset.pattern.permute.xlu0 0
    %210 = vperm.xlu0 %209, %v206
    %v211 = vpop.permute.xlu0 %210
    %214 = vset.pattern.permute.xlu0 0
    %215 = vperm.xlu0 %214, %v207
    %v216 = vpop.permute.xlu0 %215
    %vm218 = vcmask 261120
    %v220 = vsel %vm218, %v204, 0
    %v223 = vsel %vm218, %v205, 0
    %225 = vmatprep.subr.mxu0 0.0
    %226 = vmatpush1.msra.mxu0 %v200
    %227 = vmatprep.subr.mxu0 0.0
    %228 = vmatpush1.msra.mxu0 %v201
    %229 = vmatprep.subr.mxu0 0.0
    %230 = vmatpush1.msra.mxu0 %v202
    %231 = vmatprep.subr.mxu0 0.0
    %232 = vmatpush1.msra.mxu0 %v203
    %233 = vmatprep.subr.mxu0 0.0
    %234 = vmatpush1.msra.mxu0 0.0
    %235 = vmatprep.subr.mxu0 0.0
    %236 = vmatpush1.msra.mxu0 0.0
    %237 = vmatprep.subr.mxu0 0.0
    %238 = vmatpush1.msra.mxu0 0.0
    %239 = vmatprep.subr.mxu0 0.0
    %240 = vmatpush1.msra.mxu0 0.0
    %241 = vmatprep.subr.mxu0 0.0
    %242 = vmatpush1.msra.mxu0 0.0
    %243 = vmatprep.subr.mxu0 0.0
    %244 = vmatpush1.msra.mxu0 0.0
    %245 = vmatprep.subr.mxu0 0.0
    %246 = vmatpush1.msra.mxu0 0.0
    %247 = vmatprep.subr.mxu0 0.0
    %248 = vmatpush1.msra.mxu0 0.0
    %249 = vmatprep.subr.mxu0 0.0
    %250 = vmatpush1.msra.mxu0 0.0
    %251 = vmatprep.subr.mxu0 0.0
    %252 = vmatpush1.msra.mxu0 0.0
    %253 = vmatprep.subr.mxu0 0.0
    %254 = vmatpush1.msra.mxu0 0.0
    %255 = vmatprep.subr.mxu0 0.0
    %256 = vmatpush1.msra.mxu0 0.0
    %257 = vmatprep.subr.mxu0 0.0
    %258 = vmatpush1.msra.mxu0 0.0
    %259 = vmatprep.subr.mxu0 0.0
    %260 = vmatpush1.msra.mxu0 0.0
    %261 = vmatprep.subr.mxu0 0.0
    %262 = vmatpush1.msra.mxu0 0.0
    %263 = vmatprep.subr.mxu0 0.0
    %264 = vmatpush1.msra.mxu0 0.0
    %265 = vmatprep.subr.mxu0 0.0
    %266 = vmatpush1.msra.mxu0 0.0
    %267 = vmatprep.subr.mxu0 0.0
    %268 = vmatpush1.msra.mxu0 0.0
    %269 = vmatprep.subr.mxu0 0.0
    %270 = vmatpush1.msra.mxu0 0.0
    %271 = vmatprep.subr.mxu0 0.0
    %272 = vmatpush1.msra.mxu0 0.0
    %273 = vmatprep.subr.mxu0 0.0
    %274 = vmatpush1.msra.mxu0 0.0
    %275 = vmatprep.subr.mxu0 0.0
    %276 = vmatpush1.msra.mxu0 0.0
    %277 = vmatprep.subr.mxu0 0.0
    %278 = vmatpush1.msra.mxu0 0.0
    %279 = vmatprep.subr.mxu0 0.0
    %280 = vmatpush1.msra.mxu0 0.0
    %281 = vmatprep.subr.mxu0 0.0
    %282 = vmatpush1.msra.mxu0 0.0
    %283 = vmatprep.subr.mxu0 0.0
    %284 = vmatpush1.msra.mxu0 0.0
    %285 = vmatprep.subr.mxu0 0.0
    %286 = vmatpush1.msra.mxu0 0.0
    %287 = vmatprep.subr.mxu0 0.0
    %288 = vmatpush1.msra.mxu0 0.0
    %289 = vmatprep.mubr.f32.mxu0 0.0
    %290 = vmatmul.mubr.f32.gmra.mrb[0].mxu0 %v220
    %v291 = vpop.f32.mrb[0].mxu0
    %v292 = vadd.f32 %v211, %v291
    %v293 = vpop.f32.mrb[0].mxu0
    %294 = vmatprep.mubr.f32.mxu0 0.0
    %295 = vmatmul.mubr.f32.gmra.mrb[0].mxu0 %v223
    %v296 = vpop.f32.mrb[0].mxu0
    %v297 = vadd.f32 %v216, %v296
    %v298 = vpop.f32.mrb[0].mxu0
    %299 = vdwg.mxu0
    %v300 = vmax.f32 %v292, 0.0
    %v301 = vmax.f32 %v297, 0.0
    %v302 = vld [vmem:[%s6] sm:$0x1]
    %v303 = vld [vmem:[%s1] sm:$0x1]
    %v305 = vsel %vm102, %v302, 0
    %307 = vmatprep.subr.mxu0 0.0
    %308 = vmatpush1.msra.mxu0 %v300
    %309 = vmatprep.subr.mxu0 0.0
    %310 = vmatpush1.msra.mxu0 %v301
    %311 = vmatprep.subr.mxu0 0.0
    %312 = vmatpush1.msra.mxu0 0.0
    %313 = vmatprep.subr.mxu0 0.0
    %314 = vmatpush1.msra.mxu0 0.0
    %315 = vmatprep.subr.mxu0 0.0
    %316 = vmatpush1.msra.mxu0 0.0
    %317 = vmatprep.subr.mxu0 0.0
    %318 = vmatpush1.msra.mxu0 0.0
    %319 = vmatprep.subr.mxu0 0.0
    %320 = vmatpush1.msra.mxu0 0.0
    %321 = vmatprep.subr.mxu0 0.0
    %322 = vmatpush1.msra.mxu0 0.0
    %323 = vmatprep.subr.mxu0 0.0
    %324 = vmatpush1.msra.mxu0 0.0
    %325 = vmatprep.subr.mxu0 0.0
    %326 = vmatpush1.msra.mxu0 0.0
    %327 = vmatprep.subr.mxu0 0.0
    %328 = vmatpush1.msra.mxu0 0.0
    %329 = vmatprep.subr.mxu0 0.0
    %330 = vmatpush1.msra.mxu0 0.0
    %331 = vmatprep.subr.mxu0 0.0
    %332 = vmatpush1.msra.mxu0 0.0
    %333 = vmatprep.subr.mxu0 0.0
    %334 = vmatpush1.msra.mxu0 0.0
    %335 = vmatprep.subr.mxu0 0.0
    %336 = vmatpush1.msra.mxu0 0.0
    %337 = vmatprep.subr.mxu0 0.0
    %338 = vmatpush1.msra.mxu0 0.0
    %339 = vmatprep.subr.mxu0 0.0
    %340 = vmatpush1.msra.mxu0 0.0
    %341 = vmatprep.subr.mxu0 0.0
    %342 = vmatpush1.msra.mxu0 0.0
    %343 = vmatprep.subr.mxu0 0.0
    %344 = vmatpush1.msra.mxu0 0.0
    %345 = vmatprep.subr.mxu0 0.0
    %346 = vmatpush1.msra.mxu0 0.0
    %347 = vmatprep.subr.mxu0 0.0
    %348 = vmatpush1.msra.mxu0 0.0
    %349 = vmatprep.subr.mxu0 0.0
    %350 = vmatpush1.msra.mxu0 0.0
    %351 = vmatprep.subr.mxu0 0.0
    %352 = vmatpush1.msra.mxu0 0.0
    %353 = vmatprep.subr.mxu0 0.0
    %354 = vmatpush1.msra.mxu0 0.0
    %355 = vmatprep.subr.mxu0 0.0
    %356 = vmatpush1.msra.mxu0 0.0
    %357 = vmatprep.subr.mxu0 0.0
    %358 = vmatpush1.msra.mxu0 0.0
    %359 = vmatprep.subr.mxu0 0.0
    %360 = vmatpush1.msra.mxu0 0.0
    %361 = vmatprep.subr.mxu0 0.0
    %362 = vmatpush1.msra.mxu0 0.0
    %363 = vmatprep.subr.mxu0 0.0
    %364 = vmatpush1.msra.mxu0 0.0
    %365 = vmatprep.subr.mxu0 0.0
    %366 = vmatpush1.msra.mxu0 0.0
    %367 = vmatprep.subr.mxu0 0.0
    %368 = vmatpush1.msra.mxu0 0.0
    %369 = vmatprep.subr.mxu0 0.0
    %370 = vmatpush1.msra.mxu0 0.0
    %371 = vmatprep.mubr.f32.mxu0 0.0
    %372 = vmatmul.mubr.f32.gmra.mrb[0].mxu0 %v305
    %v373 = vpop.f32.mrb[0].mxu0
    %v374 = vadd.f32 %v303, %v373
    %v375 = vpop.f32.mrb[0].mxu0
    %376 = vdwg.mxu0
    %v377 = vld [vmem:[#allocation2] sm:$0x1]
    %379 = vset.pattern.permute.xlu0 0
    %380 = vperm.xlu0 %379, %v377
    %v381 = vpop.permute.xlu0 %380
    %v383 = vlaneseq
    %v384 = vshrl.u32 %v383, 7
    %v385 = vsub.s32 0, %v384
    %v386 = vrot.slane %v381, %v385
    %v387 = vadd.f32 %v374, %v386
    %v388 = vxor.u32 %v387, 2147483648
    %v389 = vmul.f32 %v388, 1.442695
    %v390 = vpow.pop %v389
    %v391 = vadd.f32 %v390, 1.0
    %v392 = vrcp.pop %v391
    %v393 = vmul.f32 1.0, %v392
    %394 = vst [vmem:[#allocation3] sm:$0x1] %v393
    // Predicated region
    $region34: #{tpu_custom_call.1} parent=1 // pred_check
      _
    $region35: #{tpu_custom_call.1} parent=1 // pred_check_branch
      %396 = sbr.rel (0) target = $region37
    $region36: #{tpu_custom_call.1} parent=1 // pred_region
      %s398 = ssub.s32 16, 16
      %399 = vsyncadd [#allocation4], %s398
      %s401 = sshll.u32 [#allocation3], 4
      %s402 = int_to_ptr.vmem [resolvable:$true] %s401
      %404 = dma.vmem_to_hbm [thread:$0]  %s402, 16, %s8, [#allocation4]
    $region37: #{tpu_custom_call.1} parent=1 // pred_fallthru
      _
    // Predicated region
    $region38: #{tpu_custom_call.1} parent=1 // pred_check
      _
    $region39: #{tpu_custom_call.1} parent=1 // pred_check_branch
      %406 = sbr.rel (0) target = $region41
    $region40: #{tpu_custom_call.1} parent=1 // pred_region
      %407 = dma.done [#allocation4], 16
    $region41: #{tpu_custom_call.1} parent=1 // pred_fallthru
      _
    %408 = vsyncpa [#allocation4], 1

</llo_original>
